<compile_context>
chip_gen: v5e
topology: v5e:2x2
jax: 0.10.0
libtpu: 0.0.40
codegen_flags: <defaults>
</compile_context>

<pallas_src>
import jax
import jax.numpy as jnp
from jax.experimental import pallas as pl
from jax.experimental.pallas import tpu as pltpu  # noqa: F401  (VMEM is the default space here)

# ---- synthetic small sizes consistent with the module's __init__ ----
EMBD_SIZE = 32        # config['embd_size']  (real MiniLM = 384)
BASE_SIZE = 32        # config['base_size']
HIDDEN    = 64        # B_size = in_features  of the mlora'd weight (A_size, B_size)
OUT_F     = 64        # A_size = out_features of the mlora'd weight
VOCAB     = 128
BATCH     = 2
SEQ       = 8
N_TOK     = BATCH * SEQ

CONFIG = {
    "model_name": "synthetic-tiny-causal-lm",
    "mlora_layers": ["model.layers.0.self_attn.q_proj.weight"],
    "base_size": BASE_SIZE,
    "embd_size": EMBD_SIZE,
}

# Packed-slab row offsets (all multiples of 8 -> native sublane slices, full lane width):
#   wp32 (96, 32):  rows [  0: 32] = w_bl^T   | [ 32: 96] = w3^T
#   wp64 (160,64):  rows [  0: 32] = w1^T     | [ 32: 96] = w2^T
#                        [ 96:128] = w_a^T    | [128:160] = w_b^T
#   bp32 (2, 32):   row 0 = b_bl, row 1 = b3
#   bp64 (4, 64):   row 0 = b1, row 1 = b2, row 2 = b_a, row 3 = b_b


# ----------------------------------------------------------------------------------
# Fused kernel: generator chain + rank-1 adaptation + embedding gather + LM forward
# ----------------------------------------------------------------------------------
def fused_mlora_kernel(ids_ref, embd_ref, wp32_ref, wp64_ref, bp32_ref, bp64_ref,
                       tok_emb_ref, lmh_t_ref, w0t_lmh_ref, logits_ref):
    f32 = jnp.float32
    dot = lambda x, y: jnp.dot(x, y, preferred_element_type=f32)

    # --- generator: baselinear -> group_basenn (Lin-ReLU-Lin-ReLU-Lin) -> A / B heads ---
    base = dot(embd_ref[...], wp32_ref[0:32, :]) + bp32_ref[0:1, :]           # (1, BASE)
    h1 = jnp.maximum(dot(base, wp64_ref[0:32, :]) + bp64_ref[0:1, :], 0.0)    # (1, 2*BASE)
    h2 = jnp.maximum(dot(h1, wp64_ref[32:96, :]) + bp64_ref[1:2, :], 0.0)     # (1, 2*BASE)
    bg = dot(h2, wp32_ref[32:96, :]) + bp32_ref[1:2, :]                       # (1, BASE)
    a_vec = dot(bg, wp64_ref[96:128, :]) + bp64_ref[2:3, :]                   # (1, OUT_F)  == A
    b_vec = dot(bg, wp64_ref[128:160, :]) + bp64_ref[3:4, :]                  # (1, HIDDEN) == B

    # --- embedding gather as a one-hot MXU matmul (ids resident in VMEM) ---
    ids = ids_ref[...]                                                        # (N, 1) int32
    vocab_iota = jax.lax.broadcasted_iota(jnp.int32, (N_TOK, VOCAB), 1)
    onehot = (vocab_iota == ids).astype(f32)                                  # (N, VOCAB)
    h = dot(onehot, tok_emb_ref[...])                                         # (N, HIDDEN)

    # --- adapted-LM forward with lm_head folded into the (rank-1 adapted) weight ---
    #   logits = h @ (W0 + A^T B)^T @ lmh^T
    #          = h @ (W0^T lmh^T)  +  (h · B) * (A @ lmh^T)
    a_lmh = dot(a_vec, lmh_t_ref[...])                                        # (1, VOCAB)
    hb = jnp.sum(h * b_vec, axis=-1, keepdims=True)                           # (N, 1) = h @ B^T
    logits_ref[...] = dot(h, w0t_lmh_ref[...]) + hb * a_lmh                   # (N, VOCAB)


def _fullblock(shape):
    # full-array block, no grid; index_map tolerant of zero grid args
    return pl.BlockSpec(shape, lambda *_: (0,) * len(shape))


def mlora_forward(x_ids, embd, kp):
    """forward(x) with the MLoRA-adapted weights; everything in one pallas_call."""
    bsz, seq = x_ids.shape
    n = bsz * seq
    ids2d = x_ids.reshape(n, 1).astype(jnp.int32)
    logits = pl.pallas_call(
        fused_mlora_kernel,
        out_shape=jax.ShapeDtypeStruct((n, VOCAB), jnp.float32),
        in_specs=[
            _fullblock((n, 1)),                       # token ids
            _fullblock((1, EMBD_SIZE)),               # sentence embedding
            _fullblock((3 * BASE_SIZE, BASE_SIZE)),   # wp32  (96, 32)
            _fullblock((5 * BASE_SIZE, HIDDEN)),      # wp64  (160, 64)
            _fullblock((2, BASE_SIZE)),               # bp32
            _fullblock((4, HIDDEN)),                  # bp64
            _fullblock((VOCAB, HIDDEN)),              # token embedding table (32 KiB)
            _fullblock((OUT_F, VOCAB)),               # lm_head^T
            _fullblock((HIDDEN, VOCAB)),              # W0^T @ lm_head^T (precomputed, frozen)
        ],
        out_specs=_fullblock((n, VOCAB)),
    )(ids2d, embd, kp["wp32"], kp["wp64"], kp["bp32"], kp["bp64"],
      kp["tok_emb"], kp["lmh_t"], kp["w0t_lmh"])
    return logits.reshape(bsz, seq, VOCAB)


# ----------------------------------------------------------------------------------
# Deterministic parameter init (shapes follow MLPGenerator.init_generator / nn.Linear),
# plus ONE-TIME kernel-layout prep: transpose + pack + fold the frozen W0 with lm_head.
# ----------------------------------------------------------------------------------
def init_params(key):
    ks = jax.random.split(key, 16)

    def lin(k, out_f, in_f):
        s = 1.0 / jnp.sqrt(jnp.float32(in_f))
        w = jax.random.normal(k, (out_f, in_f), jnp.float32) * s
        b = jax.random.normal(jax.random.fold_in(k, 1), (1, out_f), jnp.float32) * s
        return w, b

    p = {}
    p["w_bl"], p["b_bl"] = lin(ks[0], BASE_SIZE, EMBD_SIZE)          # baselinear
    p["w1"],   p["b1"]   = lin(ks[1], 2 * BASE_SIZE, BASE_SIZE)      # group_basenn
    p["w2"],   p["b2"]   = lin(ks[2], 2 * BASE_SIZE, 2 * BASE_SIZE)
    p["w3"],   p["b3"]   = lin(ks[3], BASE_SIZE, 2 * BASE_SIZE)
    p["w_a"],  p["b_a"]  = lin(ks[4], OUT_F, BASE_SIZE)              # layer_A head
    p["w_b"],  p["b_b"]  = lin(ks[5], HIDDEN, BASE_SIZE)             # layer_B head
    p["w0"] = jax.random.normal(ks[6], (OUT_F, HIDDEN), jnp.float32) / jnp.sqrt(
        jnp.float32(HIDDEN))                                         # frozen base-model weight
    p["tok_emb"] = jax.random.normal(ks[7], (VOCAB, HIDDEN), jnp.float32) * 0.1
    p["lm_head"] = jax.random.normal(ks[8], (VOCAB, OUT_F), jnp.float32) / jnp.sqrt(
        jnp.float32(OUT_F))

    # one-time packing / transposes (no per-call .T in the wrapper, fewer DMA descriptors)
    p["wp32"] = jnp.concatenate([p["w_bl"].T, p["w3"].T], axis=0)                        # (96, 32)
    p["wp64"] = jnp.concatenate([p["w1"].T, p["w2"].T, p["w_a"].T, p["w_b"].T], axis=0)  # (160, 64)
    p["bp32"] = jnp.concatenate([p["b_bl"], p["b3"]], axis=0)                            # (2, 32)
    p["bp64"] = jnp.concatenate([p["b1"], p["b2"], p["b_a"], p["b_b"]], axis=0)          # (4, 64)
    p["lmh_t"] = p["lm_head"].T                                                          # (64, 128)
    p["w0t_lmh"] = p["w0"].T @ p["lm_head"].T                                            # (64, 128)
    return p


def reference_forward(embd, p, x_ids):
    """Pure-JAX reference replicating the PyTorch math (unfused), for correctness check."""
    base = embd @ p["w_bl"].T + p["b_bl"]
    h1 = jnp.maximum(base @ p["w1"].T + p["b1"], 0.0)
    h2 = jnp.maximum(h1 @ p["w2"].T + p["b2"], 0.0)
    bg = h2 @ p["w3"].T + p["b3"]
    a = bg @ p["w_a"].T + p["b_a"]
    b = bg @ p["w_b"].T + p["b_b"]
    w_ad = p["w0"] + a.T @ b                      # param.data + A @ B
    h = jnp.take(p["tok_emb"], x_ids.reshape(-1), axis=0)
    logits = (h @ w_ad.T) @ p["lm_head"].T
    return logits.reshape(*x_ids.shape, VOCAB)


if __name__ == "__main__":
    key = jax.random.PRNGKey(0)
    k_p, k_e, k_x = jax.random.split(key, 3)

    params = init_params(k_p)
    # TODO(synk): SentenceTransformer.encode has no Pallas equivalent; use a deterministic
    #             random sentence embedding of the configured embd_size instead.
    # TODO(synk): the real forward runs a full HF transformer stack; the adapted linear +
    #             lm_head stand in for it (same rank-1 weight-adaptation semantics).
    embd = jax.random.normal(k_e, (1, EMBD_SIZE), jnp.float32)
    x_ids = jax.random.randint(k_x, (BATCH, SEQ), 0, VOCAB, jnp.int32)

    kernel_params = {k: params[k] for k in
                     ("wp32", "wp64", "bp32", "bp64", "tok_emb", "lmh_t", "w0t_lmh")}

    fwd = jax.jit(mlora_forward)
    logits = jax.block_until_ready(fwd(x_ids, embd, kernel_params))

    ref = reference_forward(embd, params, x_ids)
    assert logits.shape == (BATCH, SEQ, VOCAB)
    assert bool(jnp.allclose(logits, ref, rtol=2e-2, atol=2e-2)), "Pallas vs reference mismatch"

    print("KERNEL_OK")
</pallas_src>

<mosaic_0001>
module attributes {stable_mosaic.version = 11 : i64} {
  func.func @fused_mlora_kernel(%arg0: memref<16x1xi32, #tpu.memory_space<vmem>>, %arg1: memref<1x32xf32, #tpu.memory_space<vmem>>, %arg2: memref<96x32xf32, #tpu.memory_space<vmem>>, %arg3: memref<160x64xf32, #tpu.memory_space<vmem>>, %arg4: memref<2x32xf32, #tpu.memory_space<vmem>>, %arg5: memref<4x64xf32, #tpu.memory_space<vmem>>, %arg6: memref<128x64xf32, #tpu.memory_space<vmem>>, %arg7: memref<64x128xf32, #tpu.memory_space<vmem>>, %arg8: memref<64x128xf32, #tpu.memory_space<vmem>>, %arg9: memref<16x128xf32, #tpu.memory_space<vmem>>) attributes {dimension_semantics = [], scalar_prefetch = 0 : i64, scratch_operands = 0 : i64, tpu.core_type = #tpu.core_type<tc>} {
    %c0 = arith.constant 0 : index
    %c0_0 = arith.constant 0 : index
    %0 = vector.load %arg1[%c0, %c0_0] : memref<1x32xf32, #tpu.memory_space<vmem>>, vector<1x32xf32>
    %c0_1 = arith.constant 0 : index
    %c0_2 = arith.constant 0 : index
    %1 = vector.load %arg2[%c0_1, %c0_2] : memref<96x32xf32, #tpu.memory_space<vmem>>, vector<32x32xf32>
    %cst = arith.constant dense<0.000000e+00> : vector<1x32xf32>
    %2 = tpu.matmul %0, %1, %cst {dimension_numbers = #tpu.dot_dimension_numbers<[1], [0], [0], [1], [0, 0, 1, 1], [], []>} : vector<1x32xf32>, vector<32x32xf32>, vector<1x32xf32> -> vector<1x32xf32>
    %c0_3 = arith.constant 0 : index
    %c0_4 = arith.constant 0 : index
    %3 = vector.load %arg4[%c0_3, %c0_4] : memref<2x32xf32, #tpu.memory_space<vmem>>, vector<1x32xf32>
    %4 = arith.addf %2, %3 : vector<1x32xf32>
    %c0_5 = arith.constant 0 : index
    %c0_6 = arith.constant 0 : index
    %5 = vector.load %arg3[%c0_5, %c0_6] : memref<160x64xf32, #tpu.memory_space<vmem>>, vector<32x64xf32>
    %cst_7 = arith.constant dense<0.000000e+00> : vector<1x64xf32>
    %6 = tpu.matmul %4, %5, %cst_7 {dimension_numbers = #tpu.dot_dimension_numbers<[1], [0], [0], [1], [0, 0, 1, 1], [], []>} : vector<1x32xf32>, vector<32x64xf32>, vector<1x64xf32> -> vector<1x64xf32>
    %c0_8 = arith.constant 0 : index
    %c0_9 = arith.constant 0 : index
    %7 = vector.load %arg5[%c0_8, %c0_9] : memref<4x64xf32, #tpu.memory_space<vmem>>, vector<1x64xf32>
    %8 = arith.addf %6, %7 : vector<1x64xf32>
    %cst_10 = arith.constant 0.000000e+00 : f32
    %9 = vector.broadcast %cst_10 : f32 to vector<1x64xf32>
    %10 = arith.maximumf %8, %9 : vector<1x64xf32>
    %c32 = arith.constant 32 : index
    %c0_11 = arith.constant 0 : index
    %11 = vector.load %arg3[%c32, %c0_11] : memref<160x64xf32, #tpu.memory_space<vmem>>, vector<64x64xf32>
    %cst_12 = arith.constant dense<0.000000e+00> : vector<1x64xf32>
    %12 = tpu.matmul %10, %11, %cst_12 {dimension_numbers = #tpu.dot_dimension_numbers<[1], [0], [0], [1], [0, 0, 1, 1], [], []>} : vector<1x64xf32>, vector<64x64xf32>, vector<1x64xf32> -> vector<1x64xf32>
    %c1 = arith.constant 1 : index
    %c0_13 = arith.constant 0 : index
    %13 = vector.load %arg5[%c1, %c0_13] : memref<4x64xf32, #tpu.memory_space<vmem>>, vector<1x64xf32>
    %14 = arith.addf %12, %13 : vector<1x64xf32>
    %cst_14 = arith.constant 0.000000e+00 : f32
    %15 = vector.broadcast %cst_14 : f32 to vector<1x64xf32>
    %16 = arith.maximumf %14, %15 : vector<1x64xf32>
    %c32_15 = arith.constant 32 : index
    %c0_16 = arith.constant 0 : index
    %17 = vector.load %arg2[%c32_15, %c0_16] : memref<96x32xf32, #tpu.memory_space<vmem>>, vector<64x32xf32>
    %cst_17 = arith.constant dense<0.000000e+00> : vector<1x32xf32>
    %18 = tpu.matmul %16, %17, %cst_17 {dimension_numbers = #tpu.dot_dimension_numbers<[1], [0], [0], [1], [0, 0, 1, 1], [], []>} : vector<1x64xf32>, vector<64x32xf32>, vector<1x32xf32> -> vector<1x32xf32>
    %c1_18 = arith.constant 1 : index
    %c0_19 = arith.constant 0 : index
    %19 = vector.load %arg4[%c1_18, %c0_19] : memref<2x32xf32, #tpu.memory_space<vmem>>, vector<1x32xf32>
    %20 = arith.addf %18, %19 : vector<1x32xf32>
    %c96 = arith.constant 96 : index
    %c0_20 = arith.constant 0 : index
    %21 = vector.load %arg3[%c96, %c0_20] : memref<160x64xf32, #tpu.memory_space<vmem>>, vector<32x64xf32>
    %cst_21 = arith.constant dense<0.000000e+00> : vector<1x64xf32>
    %22 = tpu.matmul %20, %21, %cst_21 {dimension_numbers = #tpu.dot_dimension_numbers<[1], [0], [0], [1], [0, 0, 1, 1], [], []>} : vector<1x32xf32>, vector<32x64xf32>, vector<1x64xf32> -> vector<1x64xf32>
    %c2 = arith.constant 2 : index
    %c0_22 = arith.constant 0 : index
    %23 = vector.load %arg5[%c2, %c0_22] : memref<4x64xf32, #tpu.memory_space<vmem>>, vector<1x64xf32>
    %24 = arith.addf %22, %23 : vector<1x64xf32>
    %c128 = arith.constant 128 : index
    %c0_23 = arith.constant 0 : index
    %25 = vector.load %arg3[%c128, %c0_23] : memref<160x64xf32, #tpu.memory_space<vmem>>, vector<32x64xf32>
    %cst_24 = arith.constant dense<0.000000e+00> : vector<1x64xf32>
    %26 = tpu.matmul %20, %25, %cst_24 {dimension_numbers = #tpu.dot_dimension_numbers<[1], [0], [0], [1], [0, 0, 1, 1], [], []>} : vector<1x32xf32>, vector<32x64xf32>, vector<1x64xf32> -> vector<1x64xf32>
    %c3 = arith.constant 3 : index
    %c0_25 = arith.constant 0 : index
    %27 = vector.load %arg5[%c3, %c0_25] : memref<4x64xf32, #tpu.memory_space<vmem>>, vector<1x64xf32>
    %28 = arith.addf %26, %27 : vector<1x64xf32>
    %c0_26 = arith.constant 0 : index
    %c0_27 = arith.constant 0 : index
    %29 = vector.load %arg0[%c0_26, %c0_27] : memref<16x1xi32, #tpu.memory_space<vmem>>, vector<16x1xi32>
    %30 = tpu.iota {dimensions = array<i32: 1>} : vector<16x128xi32>
    %31 = vector.broadcast %29 : vector<16x1xi32> to vector<16x128xi32>
    %32 = arith.cmpi eq, %30, %31 : vector<16x128xi32>
    %33 = arith.extui %32 : vector<16x128xi1> to vector<16x128xi32>
    %34 = arith.sitofp %33 : vector<16x128xi32> to vector<16x128xf32>
    %c0_28 = arith.constant 0 : index
    %c0_29 = arith.constant 0 : index
    %35 = vector.load %arg6[%c0_28, %c0_29] : memref<128x64xf32, #tpu.memory_space<vmem>>, vector<128x64xf32>
    %cst_30 = arith.constant dense<0.000000e+00> : vector<16x64xf32>
    %36 = tpu.matmul %34, %35, %cst_30 {dimension_numbers = #tpu.dot_dimension_numbers<[1], [0], [0], [1], [0, 0, 1, 1], [], []>} : vector<16x128xf32>, vector<128x64xf32>, vector<16x64xf32> -> vector<16x64xf32>
    %c0_31 = arith.constant 0 : index
    %c0_32 = arith.constant 0 : index
    %37 = vector.load %arg7[%c0_31, %c0_32] : memref<64x128xf32, #tpu.memory_space<vmem>>, vector<64x128xf32>
    %cst_33 = arith.constant dense<0.000000e+00> : vector<1x128xf32>
    %38 = tpu.matmul %24, %37, %cst_33 {dimension_numbers = #tpu.dot_dimension_numbers<[1], [0], [0], [1], [0, 0, 1, 1], [], []>} : vector<1x64xf32>, vector<64x128xf32>, vector<1x128xf32> -> vector<1x128xf32>
    %39 = vector.broadcast %28 : vector<1x64xf32> to vector<16x64xf32>
    %40 = arith.mulf %36, %39 : vector<16x64xf32>
    %cst_34 = arith.constant dense<0.000000e+00> : vector<16xf32>
    %41 = vector.multi_reduction <add>, %40, %cst_34 [1] : vector<16x64xf32> to vector<16xf32>
    %42 = vector.shape_cast %41 : vector<16xf32> to vector<16x1xf32>
    %c0_35 = arith.constant 0 : index
    %c0_36 = arith.constant 0 : index
    %43 = vector.load %arg8[%c0_35, %c0_36] : memref<64x128xf32, #tpu.memory_space<vmem>>, vector<64x128xf32>
    %cst_37 = arith.constant dense<0.000000e+00> : vector<16x128xf32>
    %44 = tpu.matmul %36, %43, %cst_37 {dimension_numbers = #tpu.dot_dimension_numbers<[1], [0], [0], [1], [0, 0, 1, 1], [], []>} : vector<16x64xf32>, vector<64x128xf32>, vector<16x128xf32> -> vector<16x128xf32>
    %45 = vector.broadcast %42 : vector<16x1xf32> to vector<16x128xf32>
    %46 = vector.broadcast %38 : vector<1x128xf32> to vector<16x128xf32>
    %47 = arith.mulf %45, %46 : vector<16x128xf32>
    %48 = arith.addf %44, %47 : vector<16x128xf32>
    %c0_38 = arith.constant 0 : index
    %c0_39 = arith.constant 0 : index
    %49 = vector.load %arg9[%c0_38, %c0_39] : memref<16x128xf32, #tpu.memory_space<vmem>>, vector<16x128xf32>
    tpu.vector_store %arg9[%c0_38, %c0_39], %48 {strides = array<i32>} : memref<16x128xf32, #tpu.memory_space<vmem>>, vector<16x128xf32>,
    return
  }
}

</mosaic_0001>

<llo_original>
// kernel: mlora_forward.1
$region0: #{mlora_forward.1}
  #allocation0 [shape = 'u32[]', space=smem, size = 0x4, offset = 0x4, fixed_abs, tag = 'smem constant byte address 0x4 - core index']
  #allocation1 [shape = 'u32[72,128]{1,0:T(1,128)}', space=vmem, size = 0x9000, scoped, tag = 'internal scratch']
  %s0 = inlined_call_operand.vmem [shape: s32[16,1], index: 0, kind: input, shape index: {}]
  %s1 = inlined_call_operand.vmem [shape: f32[1,32], index: 1, kind: input, shape index: {}]
  %s2 = inlined_call_operand.vmem [shape: f32[96,32], index: 2, kind: input, shape index: {}]
  %s3 = inlined_call_operand.vmem [shape: f32[160,64], index: 3, kind: input, shape index: {}]
  %s4 = inlined_call_operand.vmem [shape: f32[2,32], index: 4, kind: input, shape index: {}]
  %s5 = inlined_call_operand.vmem [shape: f32[4,64], index: 5, kind: input, shape index: {}]
  %s6 = inlined_call_operand.vmem [shape: f32[128,64], index: 6, kind: input, shape index: {}]
  %s7 = inlined_call_operand.vmem [shape: f32[64,128], index: 7, kind: input, shape index: {}]
  %s8 = inlined_call_operand.vmem [shape: f32[64,128], index: 8, kind: input, shape index: {}]
  %s9 = inlined_call_operand.hbm [shape: f32[16,128], index: 9, kind: output, shape index: {}]
  %s10 = sld [smem:[#allocation0]]
  $region46: #{mlora_forward.1} parent=0
    _
  %s12 = ssub.s32 1, %s10
  %s13 = scalar_select 0, %s12, %s10
  $region1: #{mlora_forward.1} parent=0
    #allocation2 [shape = 'u8[8192]{0}', space=vmem, size = 0x2000, scoped, tag = 'output window, operand 0, single buffered']
    #allocation3 [shape = 's32[1]{0}', space=sflag, size = 0x4, scoped, tag = 'scoped memory for mlora_forward.1']
    %14 = vsyncpa [#allocation3], 0
    // Predicated region
    $region2: #{mlora_forward.1} parent=1 // pred_check
      _
    $region3: #{mlora_forward.1} parent=1 // pred_check_branch
      %16 = sbr.rel (0) target = $region5
    $region4: #{mlora_forward.1} parent=1 // pred_region
      _
    $region5: #{mlora_forward.1} parent=1 // pred_fallthru
      _
    // Predicated region
    $region6: #{mlora_forward.1} parent=1 // pred_check
      _
    $region7: #{mlora_forward.1} parent=1 // pred_check_branch
      %18 = sbr.rel (0) target = $region9
    $region8: #{mlora_forward.1} parent=1 // pred_region
      _
    $region9: #{mlora_forward.1} parent=1 // pred_fallthru
      _
    // Predicated region
    $region10: #{mlora_forward.1} parent=1 // pred_check
      _
    $region11: #{mlora_forward.1} parent=1 // pred_check_branch
      %20 = sbr.rel (0) target = $region13
    $region12: #{mlora_forward.1} parent=1 // pred_region
      _
    $region13: #{mlora_forward.1} parent=1 // pred_fallthru
      _
    // Predicated region
    $region14: #{mlora_forward.1} parent=1 // pred_check
      _
    $region15: #{mlora_forward.1} parent=1 // pred_check_branch
      %22 = sbr.rel (0) target = $region17
    $region16: #{mlora_forward.1} parent=1 // pred_region
      _
    $region17: #{mlora_forward.1} parent=1 // pred_fallthru
      _
    // Predicated region
    $region18: #{mlora_forward.1} parent=1 // pred_check
      _
    $region19: #{mlora_forward.1} parent=1 // pred_check_branch
      %24 = sbr.rel (0) target = $region21
    $region20: #{mlora_forward.1} parent=1 // pred_region
      _
    $region21: #{mlora_forward.1} parent=1 // pred_fallthru
      _
    // Predicated region
    $region22: #{mlora_forward.1} parent=1 // pred_check
      _
    $region23: #{mlora_forward.1} parent=1 // pred_check_branch
      %26 = sbr.rel (0) target = $region25
    $region24: #{mlora_forward.1} parent=1 // pred_region
      _
    $region25: #{mlora_forward.1} parent=1 // pred_fallthru
      _
    // Predicated region
    $region26: #{mlora_forward.1} parent=1 // pred_check
      _
    $region27: #{mlora_forward.1} parent=1 // pred_check_branch
      %28 = sbr.rel (0) target = $region29
    $region28: #{mlora_forward.1} parent=1 // pred_region
      _
    $region29: #{mlora_forward.1} parent=1 // pred_fallthru
      _
    // Predicated region
    $region30: #{mlora_forward.1} parent=1 // pred_check
      _
    $region31: #{mlora_forward.1} parent=1 // pred_check_branch
      %30 = sbr.rel (0) target = $region33
    $region32: #{mlora_forward.1} parent=1 // pred_region
      _
    $region33: #{mlora_forward.1} parent=1 // pred_fallthru
      _
    // Predicated region
    $region34: #{mlora_forward.1} parent=1 // pred_check
      _
    $region35: #{mlora_forward.1} parent=1 // pred_check_branch
      %32 = sbr.rel (0) target = $region37
    $region36: #{mlora_forward.1} parent=1 // pred_region
      _
    $region37: #{mlora_forward.1} parent=1 // pred_fallthru
      _
    %v33 = vld [vmem:[%s1] sm:$0x1]
    %v34 = vld [vmem:[%s2] sm:$0xff]
    %v35 = vld [vmem:[%s2 + $0x8] sm:$0xff]
    %v36 = vld [vmem:[%s2 + $0x10] sm:$0xff]
    %v37 = vld [vmem:[%s2 + $0x18] sm:$0xff]
    %v38 = vld [vmem:[%s4] sm:$0x1]
    %vm39 = vcmask 261120
    %v41 = vsel %vm39, %v33, 0
    %43 = vmatpush.msra.mxu0 0.0
    %44 = vmatpush.msra.mxu0 0.0
    %45 = vmatpush.msra.mxu0 0.0
    %46 = vmatpush.msra.mxu0 0.0
    %47 = vmatpush.msra.mxu0 0.0
    %48 = vmatpush.msra.mxu0 0.0
    %49 = vmatpush.msra.mxu0 0.0
    %50 = vmatpush.msra.mxu0 0.0
    %51 = vmatpush.msra.mxu0 0.0
    %52 = vmatpush.msra.mxu0 0.0
    %53 = vmatpush.msra.mxu0 0.0
    %54 = vmatpush.msra.mxu0 0.0
    %55 = vmatpush.msra.mxu0 %v37
    %56 = vmatpush.msra.mxu0 %v36
    %57 = vmatpush.msra.mxu0 %v35
    %58 = vmatpush.msra.mxu0 %v34
    %59 = vmatmul.f32.gmra.mxu0 %v41
    %v60 = vpop.f32.mrf.mxu0
    %v61 = vadd.f32 %v38, %v60
    %62 = vdwg.mxu0
    %v63 = vld [vmem:[%s3] sm:$0xff]
    %v64 = vld [vmem:[%s3 + $0x8] sm:$0xff]
    %v65 = vld [vmem:[%s3 + $0x10] sm:$0xff]
    %v66 = vld [vmem:[%s3 + $0x18] sm:$0xff]
    %v67 = vld [vmem:[%s5] sm:$0x1]
    %v69 = vsel %vm39, %v61, 0
    %71 = vmatpush.msra.mxu0 0.0
    %72 = vmatpush.msra.mxu0 0.0
    %73 = vmatpush.msra.mxu0 0.0
    %74 = vmatpush.msra.mxu0 0.0
    %75 = vmatpush.msra.mxu0 0.0
    %76 = vmatpush.msra.mxu0 0.0
    %77 = vmatpush.msra.mxu0 0.0
    %78 = vmatpush.msra.mxu0 0.0
    %79 = vmatpush.msra.mxu0 0.0
    %80 = vmatpush.msra.mxu0 0.0
    %81 = vmatpush.msra.mxu0 0.0
    %82 = vmatpush.msra.mxu0 0.0
    %83 = vmatpush.msra.mxu0 %v66
    %84 = vmatpush.msra.mxu0 %v65
    %85 = vmatpush.msra.mxu0 %v64
    %86 = vmatpush.msra.mxu0 %v63
    %87 = vmatmul.f32.gmra.mxu0 %v69
    %v88 = vpop.f32.mrf.mxu0
    %v89 = vadd.f32 %v67, %v88
    %90 = vdwg.mxu0
    %v91 = vmax.f32 %v89, 0.0
    %v92 = vld [vmem:[%s3 + $0x20] sm:$0xff]
    %v93 = vld [vmem:[%s3 + $0x28] sm:$0xff]
    %v94 = vld [vmem:[%s3 + $0x30] sm:$0xff]
    %v95 = vld [vmem:[%s3 + $0x38] sm:$0xff]
    %v96 = vld [vmem:[%s3 + $0x40] sm:$0xff]
    %v97 = vld [vmem:[%s3 + $0x48] sm:$0xff]
    %v98 = vld [vmem:[%s3 + $0x50] sm:$0xff]
    %v99 = vld [vmem:[%s3 + $0x58] sm:$0xff]
    %v100 = vld [vmem:[%s5 + $0x1] sm:$0x1]
    %vm101 = vcmask 523264
    %v103 = vsel %vm101, %v91, 0
    %105 = vmatpush.msra.mxu0 0.0
    %106 = vmatpush.msra.mxu0 0.0
    %107 = vmatpush.msra.mxu0 0.0
    %108 = vmatpush.msra.mxu0 0.0
    %109 = vmatpush.msra.mxu0 0.0
    %110 = vmatpush.msra.mxu0 0.0
    %111 = vmatpush.msra.mxu0 0.0
    %112 = vmatpush.msra.mxu0 0.0
    %113 = vmatpush.msra.mxu0 %v99
    %114 = vmatpush.msra.mxu0 %v98
    %115 = vmatpush.msra.mxu0 %v97
    %116 = vmatpush.msra.mxu0 %v96
    %117 = vmatpush.msra.mxu0 %v95
    %118 = vmatpush.msra.mxu0 %v94
    %119 = vmatpush.msra.mxu0 %v93
    %120 = vmatpush.msra.mxu0 %v92
    %121 = vmatmul.f32.gmra.mxu0 %v103
    %v122 = vpop.f32.mrf.mxu0
    %v123 = vadd.f32 %v100, %v122
    %124 = vdwg.mxu0
    %v125 = vmax.f32 %v123, 0.0
    %v126 = vld [vmem:[%s2 + $0x20] sm:$0xff]
    %v127 = vld [vmem:[%s2 + $0x28] sm:$0xff]
    %v128 = vld [vmem:[%s2 + $0x30] sm:$0xff]
    %v129 = vld [vmem:[%s2 + $0x38] sm:$0xff]
    %v130 = vld [vmem:[%s2 + $0x40] sm:$0xff]
    %v131 = vld [vmem:[%s2 + $0x48] sm:$0xff]
    %v132 = vld [vmem:[%s2 + $0x50] sm:$0xff]
    %v133 = vld [vmem:[%s2 + $0x58] sm:$0xff]
    %v134 = vld [vmem:[%s4 + $0x1] sm:$0x1]
    %v136 = vsel %vm101, %v125, 0
    %138 = vmatpush.msra.mxu0 0.0
    %139 = vmatpush.msra.mxu0 0.0
    %140 = vmatpush.msra.mxu0 0.0
    %141 = vmatpush.msra.mxu0 0.0
    %142 = vmatpush.msra.mxu0 0.0
    %143 = vmatpush.msra.mxu0 0.0
    %144 = vmatpush.msra.mxu0 0.0
    %145 = vmatpush.msra.mxu0 0.0
    %146 = vmatpush.msra.mxu0 %v133
    %147 = vmatpush.msra.mxu0 %v132
    %148 = vmatpush.msra.mxu0 %v131
    %149 = vmatpush.msra.mxu0 %v130
    %150 = vmatpush.msra.mxu0 %v129
    %151 = vmatpush.msra.mxu0 %v128
    %152 = vmatpush.msra.mxu0 %v127
    %153 = vmatpush.msra.mxu0 %v126
    %154 = vmatmul.f32.gmra.mxu0 %v136
    %v155 = vpop.f32.mrf.mxu0
    %v156 = vadd.f32 %v134, %v155
    %157 = vdwg.mxu0
    %v158 = vld [vmem:[%s3 + $0x60] sm:$0xff]
    %v159 = vld [vmem:[%s3 + $0x68] sm:$0xff]
    %v160 = vld [vmem:[%s3 + $0x70] sm:$0xff]
    %v161 = vld [vmem:[%s3 + $0x78] sm:$0xff]
    %v162 = vld [vmem:[%s5 + $0x2] sm:$0x1]
    %v164 = vsel %vm39, %v156, 0
    %166 = vmatpush.msra.mxu0 0.0
    %167 = vmatpush.msra.mxu0 0.0
    %168 = vmatpush.msra.mxu0 0.0
    %169 = vmatpush.msra.mxu0 0.0
    %170 = vmatpush.msra.mxu0 0.0
    %171 = vmatpush.msra.mxu0 0.0
    %172 = vmatpush.msra.mxu0 0.0
    %173 = vmatpush.msra.mxu0 0.0
    %174 = vmatpush.msra.mxu0 0.0
    %175 = vmatpush.msra.mxu0 0.0
    %176 = vmatpush.msra.mxu0 0.0
    %177 = vmatpush.msra.mxu0 0.0
    %178 = vmatpush.msra.mxu0 %v161
    %179 = vmatpush.msra.mxu0 %v160
    %180 = vmatpush.msra.mxu0 %v159
    %181 = vmatpush.msra.mxu0 %v158
    %182 = vmatmul.f32.gmra.mxu0 %v164
    %v183 = vpop.f32.mrf.mxu0
    %v184 = vadd.f32 %v162, %v183
    %185 = vdwg.mxu0
    %v186 = vld [vmem:[%s3 + $0x80] sm:$0xff]
    %v187 = vld [vmem:[%s3 + $0x88] sm:$0xff]
    %v188 = vld [vmem:[%s3 + $0x90] sm:$0xff]
    %v189 = vld [vmem:[%s3 + $0x98] sm:$0xff]
    %v190 = vld [vmem:[%s5 + $0x3] sm:$0x1]
    %191 = vmatpush.msra.mxu0 0.0
    %192 = vmatpush.msra.mxu0 0.0
    %193 = vmatpush.msra.mxu0 0.0
    %194 = vmatpush.msra.mxu0 0.0
    %195 = vmatpush.msra.mxu0 0.0
    %196 = vmatpush.msra.mxu0 0.0
    %197 = vmatpush.msra.mxu0 0.0
    %198 = vmatpush.msra.mxu0 0.0
    %199 = vmatpush.msra.mxu0 0.0
    %200 = vmatpush.msra.mxu0 0.0
    %201 = vmatpush.msra.mxu0 0.0
    %202 = vmatpush.msra.mxu0 0.0
    %203 = vmatpush.msra.mxu0 %v189
    %204 = vmatpush.msra.mxu0 %v188
    %205 = vmatpush.msra.mxu0 %v187
    %206 = vmatpush.msra.mxu0 %v186
    %207 = vmatmul.f32.gmra.mxu0 %v164
    %v208 = vpop.f32.mrf.mxu0
    %v209 = vadd.f32 %v190, %v208
    %210 = vdwg.mxu0
    %v211 = vld [vmem:[%s0] sm:$0xff]
    %v212 = vld [vmem:[%s0 + $0x8] sm:$0xff]
    %v213 = vlaneseq
    %v214 = vand.u32 %v213, 127
    %215 = vset.pattern.permute.xlu0 0
    %216 = vperm.xlu0 %215, %v211
    %v217 = vpop.permute.xlu0 %216
    %218 = vset.pattern.permute.xlu0 0
    %219 = vperm.xlu0 %218, %v212
    %v220 = vpop.permute.xlu0 %219
    %vm221 = vcmp.eq.s32.totalorder %v214, %v217
    %vm222 = vcmp.eq.s32.totalorder %v214, %v220
    %v223 = vsel %vm221, 1, 0
    %v224 = vsel %vm222, 1, 0
    %v225 = vcvt.s32.f32 %v223
    %v226 = vcvt.s32.f32 %v224
    %v227 = vld [vmem:[%s6] sm:$0xff]
    %v228 = vld [vmem:[%s6 + $0x8] sm:$0xff]
    %v229 = vld [vmem:[%s6 + $0x10] sm:$0xff]
    %v230 = vld [vmem:[%s6 + $0x18] sm:$0xff]
    %v231 = vld [vmem:[%s6 + $0x20] sm:$0xff]
    %v232 = vld [vmem:[%s6 + $0x28] sm:$0xff]
    %v233 = vld [vmem:[%s6 + $0x30] sm:$0xff]
    %v234 = vld [vmem:[%s6 + $0x38] sm:$0xff]
    %v235 = vld [vmem:[%s6 + $0x40] sm:$0xff]
    %v236 = vld [vmem:[%s6 + $0x48] sm:$0xff]
    %v237 = vld [vmem:[%s6 + $0x50] sm:$0xff]
    %v238 = vld [vmem:[%s6 + $0x58] sm:$0xff]
    %v239 = vld [vmem:[%s6 + $0x60] sm:$0xff]
    %v240 = vld [vmem:[%s6 + $0x68] sm:$0xff]
    %v241 = vld [vmem:[%s6 + $0x70] sm:$0xff]
    %v242 = vld [vmem:[%s6 + $0x78] sm:$0xff]
    %243 = vmatpush.msra.mxu0 %v242
    %244 = vmatpush.msra.mxu0 %v241
    %245 = vmatpush.msra.mxu0 %v240
    %246 = vmatpush.msra.mxu0 %v239
    %247 = vmatpush.msra.mxu0 %v238
    %248 = vmatpush.msra.mxu0 %v237
    %249 = vmatpush.msra.mxu0 %v236
    %250 = vmatpush.msra.mxu0 %v235
    %251 = vmatpush.msra.mxu0 %v234
    %252 = vmatpush.msra.mxu0 %v233
    %253 = vmatpush.msra.mxu0 %v232
    %254 = vmatpush.msra.mxu0 %v231
    %255 = vmatpush.msra.mxu0 %v230
    %256 = vmatpush.msra.mxu0 %v229
    %257 = vmatpush.msra.mxu0 %v228
    %258 = vmatpush.msra.mxu0 %v227
    %259 = vmatmul.f32.gmra.mxu0 %v225
    %v260 = vpop.f32.mrf.mxu0
    %v261 = vadd.f32 0.0, %v260
    %262 = vmatmul.f32.gmra.mxu0 %v226
    %v263 = vpop.f32.mrf.mxu0
    %v264 = vadd.f32 0.0, %v263
    %265 = vdwg.mxu0
    %v266 = vld [vmem:[%s7] sm:$0xff]
    %v267 = vld [vmem:[%s7 + $0x8] sm:$0xff]
    %v268 = vld [vmem:[%s7 + $0x10] sm:$0xff]
    %v269 = vld [vmem:[%s7 + $0x18] sm:$0xff]
    %v270 = vld [vmem:[%s7 + $0x20] sm:$0xff]
    %v271 = vld [vmem:[%s7 + $0x28] sm:$0xff]
    %v272 = vld [vmem:[%s7 + $0x30] sm:$0xff]
    %v273 = vld [vmem:[%s7 + $0x38] sm:$0xff]
    %v275 = vsel %vm101, %v184, 0
    %277 = vmatpush.msra.mxu0 0.0
    %278 = vmatpush.msra.mxu0 0.0
    %279 = vmatpush.msra.mxu0 0.0
    %280 = vmatpush.msra.mxu0 0.0
    %281 = vmatpush.msra.mxu0 0.0
    %282 = vmatpush.msra.mxu0 0.0
    %283 = vmatpush.msra.mxu0 0.0
    %284 = vmatpush.msra.mxu0 0.0
    %285 = vmatpush.msra.mxu0 %v273
    %286 = vmatpush.msra.mxu0 %v272
    %287 = vmatpush.msra.mxu0 %v271
    %288 = vmatpush.msra.mxu0 %v270
    %289 = vmatpush.msra.mxu0 %v269
    %290 = vmatpush.msra.mxu0 %v268
    %291 = vmatpush.msra.mxu0 %v267
    %292 = vmatpush.msra.mxu0 %v266
    %293 = vmatmul.f32.gmra.mxu0 %v275
    %v294 = vpop.f32.mrf.mxu0
    %v295 = vadd.f32 0.0, %v294
    %296 = vdwg.mxu0
    %v297 = vperm.slane %v209, 0
    %v298 = vmul.f32 %v261, %v297
    %v299 = vmul.f32 %v264, %v297
    %v300 = vsel %vm101, %v298, 0.0
    %301 = vadd.xlane.f32.xlu0 %v300
    %v302 = vpop.xlane.xlu0 %301
    %v303 = vsel %vm101, %v299, 0.0
    %304 = vadd.xlane.f32.xlu0 %v303
    %v305 = vpop.xlane.xlu0 %304
    %v306 = vld [vmem:[%s8] sm:$0xff]
    %v307 = vld [vmem:[%s8 + $0x8] sm:$0xff]
    %v308 = vld [vmem:[%s8 + $0x10] sm:$0xff]
    %v309 = vld [vmem:[%s8 + $0x18] sm:$0xff]
    %v310 = vld [vmem:[%s8 + $0x20] sm:$0xff]
    %v311 = vld [vmem:[%s8 + $0x28] sm:$0xff]
    %v312 = vld [vmem:[%s8 + $0x30] sm:$0xff]
    %v313 = vld [vmem:[%s8 + $0x38] sm:$0xff]
    %v314 = vperm.slane %v295, 0
    %v315 = vmul.f32 %v302, %v314
    %v316 = vmul.f32 %v305, %v314
    %v318 = vsel %vm101, %v261, 0
    %v321 = vsel %vm101, %v264, 0
    %323 = vmatpush.msra.mxu0 0.0
    %324 = vmatpush.msra.mxu0 0.0
    %325 = vmatpush.msra.mxu0 0.0
    %326 = vmatpush.msra.mxu0 0.0
    %327 = vmatpush.msra.mxu0 0.0
    %328 = vmatpush.msra.mxu0 0.0
    %329 = vmatpush.msra.mxu0 0.0
    %330 = vmatpush.msra.mxu0 0.0
    %331 = vmatpush.msra.mxu0 %v313
    %332 = vmatpush.msra.mxu0 %v312
    %333 = vmatpush.msra.mxu0 %v311
    %334 = vmatpush.msra.mxu0 %v310
    %335 = vmatpush.msra.mxu0 %v309
    %336 = vmatpush.msra.mxu0 %v308
    %337 = vmatpush.msra.mxu0 %v307
    %338 = vmatpush.msra.mxu0 %v306
    %339 = vmatmul.f32.gmra.mxu0 %v318
    %v340 = vpop.f32.mrf.mxu0
    %v341 = vadd.f32 %v315, %v340
    %342 = vmatmul.f32.gmra.mxu0 %v321
    %v343 = vpop.f32.mrf.mxu0
    %v344 = vadd.f32 %v316, %v343
    %345 = vdwg.mxu0
    %346 = vst [vmem:[#allocation2] sm:$0xff] %v341
    %347 = vst [vmem:[#allocation2 + $0x8] sm:$0xff] %v344
    // Predicated region
    $region38: #{mlora_forward.1} parent=1 // pred_check
      _
    $region39: #{mlora_forward.1} parent=1 // pred_check_branch
      %349 = sbr.rel (0) target = $region41
    $region40: #{mlora_forward.1} parent=1 // pred_region
      %351 = vsyncadd [#allocation3], 0
      %s352 = sshll.u32 [#allocation2], 4
      %s353 = int_to_ptr.vmem [resolvable:$true] %s352
      %s354 = sshll.u32 %s9, 4
      %s355 = int_to_ptr.hbm [resolvable:$true] %s354
      %360 = dma.vmem_to_hbm [thread:$0]  %s353, 256, %s355, [#allocation3], 128, 128, 8
    $region41: #{mlora_forward.1} parent=1 // pred_fallthru
      _
    // Predicated region
    $region42: #{mlora_forward.1} parent=1 // pred_check
      _
    $region43: #{mlora_forward.1} parent=1 // pred_check_branch
      %362 = sbr.rel (0) target = $region45
    $region44: #{mlora_forward.1} parent=1 // pred_region
      %364 = dma.done [#allocation3], 256
    $region45: #{mlora_forward.1} parent=1 // pred_fallthru
      _
    %365 = vsyncpa [#allocation3], 1

</llo_original>
